<compile_context>
chip_gen: v7x
topology: tpu7x:2x2x1
jax: 0.10.0
libtpu: 0.0.40
codegen_flags: <defaults>
</compile_context>

<pallas_src>
import jax
import jax.numpy as jnp
from jax.experimental import pallas as pl
from jax.experimental.pallas import tpu as pltpu

_BN_EPS = 1e-5
_HPAD = 128  # hidden width 100 padded to full lane width


def _net_forward_kernel(x_ref, p_ref, w2_ref, o_ref):
    x = x_ref[...]            # (B, 2)   f32
    P = p_ref[...]            # (16, 128) f32 packed params

    w1r0 = P[0:1, :]          # fc1.weight row 0  (1, 128)
    w1r1 = P[1:2, :]          # fc1.weight row 1
    b1   = P[2:3, :]
    g1   = P[3:4, :]
    bt1  = P[4:5, :]
    b2   = P[5:6, :]
    g2   = P[6:7, :]
    bt2  = P[7:8, :]
    w3r  = P[8:9, :]          # fc3.weight as a row (1, 128)
    b3   = P[9:10, 0:1]       # fc3.bias  (1, 1)

    # ---- fc1 (K=2) as two VPU broadcast-FMAs + ReLU ------------------------
    h = x[:, 0:1] * w1r0 + x[:, 1:2] * w1r1 + b1          # (B, 128)
    h = jnp.maximum(h, 0.0)

    # ---- bn1 folded into a single affine (training-mode batch stats) -------
    mu = jnp.mean(h, axis=0, keepdims=True)
    var = jnp.maximum(jnp.mean(h * h, axis=0, keepdims=True) - mu * mu, 0.0)
    a = g1 * jax.lax.rsqrt(var + _BN_EPS)
    h = h * a + (bt1 - mu * a)

    # ---- fc2: the one real MXU matmul (128x128 tile) + ReLU ----------------
    h = jnp.dot(h, w2_ref[...], preferred_element_type=jnp.float32) + b2
    h = jnp.maximum(h, 0.0)

    # ---- bn2 folded affine --------------------------------------------------
    mu = jnp.mean(h, axis=0, keepdims=True)
    var = jnp.maximum(jnp.mean(h * h, axis=0, keepdims=True) - mu * mu, 0.0)
    a = g2 * jax.lax.rsqrt(var + _BN_EPS)
    h = h * a + (bt2 - mu * a)

    # ---- fc3 (N=1) as VPU mul + lane reduce, then sigmoid (tanh form) ------
    y = jnp.sum(h * w3r, axis=-1, keepdims=True) + b3      # (B, 1)
    o_ref[...] = (0.5 * jnp.tanh(0.5 * y) + 0.5).astype(o_ref.dtype)


def prepare_params(params):
    """One-time packing of all Net parameters into (packed(16,128), w2(128,128))."""
    w1, b1, g1, beta1, w2, b2, g2, beta2, w3, b3 = params
    f32 = jnp.float32
    H = w1.shape[1]

    def pad_row(v):
        v = jnp.asarray(v, f32).reshape(-1)
        return jnp.pad(v, (0, _HPAD - v.shape[0]))

    rows = [
        pad_row(w1[0, :]),          # 0: fc1.weight row 0
        pad_row(w1[1, :]),          # 1: fc1.weight row 1
        pad_row(b1),                # 2: fc1.bias
        pad_row(g1),                # 3: bn1.weight (gamma); padded lanes = 0
        pad_row(beta1),             # 4: bn1.bias   (beta)
        pad_row(b2),                # 5: fc2.bias
        pad_row(g2),                # 6: bn2.weight
        pad_row(beta2),             # 7: bn2.bias
        pad_row(w3[:, 0]),          # 8: fc3.weight as a row
        jnp.full((_HPAD,), jnp.asarray(b3, f32).reshape(-1)[0], f32),  # 9: fc3.bias
    ]
    rows += [jnp.zeros((_HPAD,), f32)] * (16 - len(rows))
    packed = jnp.stack(rows, axis=0)                       # (16, 128)

    w2p = jnp.zeros((_HPAD, _HPAD), f32).at[:H, :H].set(jnp.asarray(w2, f32))
    return packed, w2p


def net_forward(x, packed, w2p):
    """Hot path: a single pallas_call, no grid, whole-array VMEM blocks."""
    B = x.shape[0]
    return pl.pallas_call(
        _net_forward_kernel,
        out_shape=jax.ShapeDtypeStruct((B, 1), x.dtype),
        in_specs=[
            pl.BlockSpec(memory_space=pltpu.MemorySpace.VMEM),
            pl.BlockSpec(memory_space=pltpu.MemorySpace.VMEM),
            pl.BlockSpec(memory_space=pltpu.MemorySpace.VMEM),
        ],
        out_specs=pl.BlockSpec(memory_space=pltpu.MemorySpace.VMEM),
    )(x, packed, w2p)


def net_forward_ref(x, params):
    """Pure-JAX reference with identical (training-mode BN) semantics."""
    w1, b1, g1, beta1, w2, b2, g2, beta2, w3, b3 = params
    h = jax.nn.relu(x @ w1 + b1)
    mu = h.mean(axis=0)
    var = ((h - mu) ** 2).mean(axis=0)
    h = (h - mu) / jnp.sqrt(var + _BN_EPS) * g1 + beta1
    h = jax.nn.relu(h @ w2 + b2)
    mu = h.mean(axis=0)
    var = ((h - mu) ** 2).mean(axis=0)
    h = (h - mu) / jnp.sqrt(var + _BN_EPS) * g2 + beta2
    return jax.nn.sigmoid(h @ w3 + b3)


if __name__ == "__main__":
    key = jax.random.PRNGKey(0)
    keys = jax.random.split(key, 11)

    B, D_IN, H, D_OUT = 64, 2, 100, 1
    x = jax.random.normal(keys[0], (B, D_IN), dtype=jnp.float32)

    params = (
        0.8 * jax.random.normal(keys[1], (D_IN, H), jnp.float32),    # fc1.weight^T
        0.1 * jax.random.normal(keys[2], (H,), jnp.float32),         # fc1.bias
        1.0 + 0.2 * jax.random.normal(keys[3], (H,), jnp.float32),   # bn1.weight (gamma)
        0.1 * jax.random.normal(keys[4], (H,), jnp.float32),         # bn1.bias  (beta)
        0.15 * jax.random.normal(keys[5], (H, H), jnp.float32),      # fc2.weight^T
        0.1 * jax.random.normal(keys[6], (H,), jnp.float32),         # fc2.bias
        1.0 + 0.2 * jax.random.normal(keys[7], (H,), jnp.float32),   # bn2.weight
        0.1 * jax.random.normal(keys[8], (H,), jnp.float32),         # bn2.bias
        0.15 * jax.random.normal(keys[9], (H, D_OUT), jnp.float32),  # fc3.weight^T
        0.1 * jax.random.normal(keys[10], (D_OUT,), jnp.float32),    # fc3.bias
    )

    # One-time param packing (hoisted out of the per-call path).
    packed, w2p = prepare_params(params)
    packed, w2p = jax.block_until_ready((packed, w2p))

    out = jax.block_until_ready(net_forward(x, packed, w2p))
    ref = net_forward_ref(x, params)

    assert out.shape == (B, D_OUT)
    assert bool(jnp.allclose(out, ref, atol=3e-3, rtol=0.0)), \
        float(jnp.max(jnp.abs(out - ref)))

    print("KERNEL_OK")
</pallas_src>

<mosaic_0001>
module attributes {stable_mosaic.version = 11 : i64} {
  func.func @_net_forward_kernel(%arg0: memref<64x2xf32, #tpu.memory_space<vmem>>, %arg1: memref<16x128xf32, #tpu.memory_space<vmem>>, %arg2: memref<128x128xf32, #tpu.memory_space<vmem>>, %arg3: memref<64x1xf32, #tpu.memory_space<vmem>>) attributes {dimension_semantics = [], scalar_prefetch = 0 : i64, scratch_operands = 0 : i64, tpu.core_type = #tpu.core_type<tc>} {
    %c0 = arith.constant 0 : index
    %c0_0 = arith.constant 0 : index
    %0 = vector.load %arg0[%c0, %c0_0] : memref<64x2xf32, #tpu.memory_space<vmem>>, vector<64x2xf32>
    %c0_1 = arith.constant 0 : index
    %c0_2 = arith.constant 0 : index
    %1 = vector.load %arg1[%c0_1, %c0_2] : memref<16x128xf32, #tpu.memory_space<vmem>>, vector<16x128xf32>
    %2 = vector.extract_strided_slice %1 {offsets = [0, 0], sizes = [1, 128], strides = [1, 1]} : vector<16x128xf32> to vector<1x128xf32>
    %3 = vector.extract_strided_slice %1 {offsets = [1, 0], sizes = [1, 128], strides = [1, 1]} : vector<16x128xf32> to vector<1x128xf32>
    %4 = vector.extract_strided_slice %1 {offsets = [2, 0], sizes = [1, 128], strides = [1, 1]} : vector<16x128xf32> to vector<1x128xf32>
    %5 = vector.extract_strided_slice %1 {offsets = [3, 0], sizes = [1, 128], strides = [1, 1]} : vector<16x128xf32> to vector<1x128xf32>
    %6 = vector.extract_strided_slice %1 {offsets = [4, 0], sizes = [1, 128], strides = [1, 1]} : vector<16x128xf32> to vector<1x128xf32>
    %7 = vector.extract_strided_slice %1 {offsets = [5, 0], sizes = [1, 128], strides = [1, 1]} : vector<16x128xf32> to vector<1x128xf32>
    %8 = vector.extract_strided_slice %1 {offsets = [6, 0], sizes = [1, 128], strides = [1, 1]} : vector<16x128xf32> to vector<1x128xf32>
    %9 = vector.extract_strided_slice %1 {offsets = [7, 0], sizes = [1, 128], strides = [1, 1]} : vector<16x128xf32> to vector<1x128xf32>
    %10 = vector.extract_strided_slice %1 {offsets = [8, 0], sizes = [1, 128], strides = [1, 1]} : vector<16x128xf32> to vector<1x128xf32>
    %11 = vector.extract_strided_slice %1 {offsets = [9, 0], sizes = [1, 1], strides = [1, 1]} : vector<16x128xf32> to vector<1x1xf32>
    %12 = vector.extract_strided_slice %0 {offsets = [0, 0], sizes = [64, 1], strides = [1, 1]} : vector<64x2xf32> to vector<64x1xf32>
    %13 = vector.broadcast %12 : vector<64x1xf32> to vector<64x128xf32>
    %14 = vector.broadcast %2 : vector<1x128xf32> to vector<64x128xf32>
    %15 = arith.mulf %13, %14 : vector<64x128xf32>
    %16 = vector.extract_strided_slice %0 {offsets = [0, 1], sizes = [64, 1], strides = [1, 1]} : vector<64x2xf32> to vector<64x1xf32>
    %17 = vector.broadcast %16 : vector<64x1xf32> to vector<64x128xf32>
    %18 = vector.broadcast %3 : vector<1x128xf32> to vector<64x128xf32>
    %19 = arith.mulf %17, %18 : vector<64x128xf32>
    %20 = arith.addf %15, %19 : vector<64x128xf32>
    %21 = vector.broadcast %4 : vector<1x128xf32> to vector<64x128xf32>
    %22 = arith.addf %20, %21 : vector<64x128xf32>
    %cst = arith.constant 0.000000e+00 : f32
    %23 = vector.broadcast %cst : f32 to vector<64x128xf32>
    %24 = arith.maximumf %22, %23 : vector<64x128xf32>
    %cst_3 = arith.constant dense<0.000000e+00> : vector<128xf32>
    %25 = vector.multi_reduction <add>, %24, %cst_3 [0] : vector<64x128xf32> to vector<128xf32>
    %26 = vector.shape_cast %25 : vector<128xf32> to vector<1x128xf32>
    %cst_4 = arith.constant 6.400000e+01 : f32
    %27 = vector.broadcast %cst_4 : f32 to vector<1x128xf32>
    %28 = arith.divf %26, %27 : vector<1x128xf32>
    %29 = arith.mulf %24, %24 : vector<64x128xf32>
    %cst_5 = arith.constant dense<0.000000e+00> : vector<128xf32>
    %30 = vector.multi_reduction <add>, %29, %cst_5 [0] : vector<64x128xf32> to vector<128xf32>
    %31 = vector.shape_cast %30 : vector<128xf32> to vector<1x128xf32>
    %cst_6 = arith.constant 6.400000e+01 : f32
    %32 = vector.broadcast %cst_6 : f32 to vector<1x128xf32>
    %33 = arith.divf %31, %32 : vector<1x128xf32>
    %34 = arith.mulf %28, %28 : vector<1x128xf32>
    %35 = arith.subf %33, %34 : vector<1x128xf32>
    %cst_7 = arith.constant 0.000000e+00 : f32
    %36 = vector.broadcast %cst_7 : f32 to vector<1x128xf32>
    %37 = arith.maximumf %35, %36 : vector<1x128xf32>
    %cst_8 = arith.constant 9.99999974E-6 : f32
    %38 = vector.broadcast %cst_8 : f32 to vector<1x128xf32>
    %39 = arith.addf %37, %38 : vector<1x128xf32>
    %40 = math.rsqrt %39 : vector<1x128xf32>
    %41 = arith.mulf %5, %40 : vector<1x128xf32>
    %42 = vector.broadcast %41 : vector<1x128xf32> to vector<64x128xf32>
    %43 = arith.mulf %24, %42 : vector<64x128xf32>
    %44 = arith.mulf %28, %41 : vector<1x128xf32>
    %45 = arith.subf %6, %44 : vector<1x128xf32>
    %46 = vector.broadcast %45 : vector<1x128xf32> to vector<64x128xf32>
    %47 = arith.addf %43, %46 : vector<64x128xf32>
    %c0_9 = arith.constant 0 : index
    %c0_10 = arith.constant 0 : index
    %48 = vector.load %arg2[%c0_9, %c0_10] : memref<128x128xf32, #tpu.memory_space<vmem>>, vector<128x128xf32>
    %cst_11 = arith.constant dense<0.000000e+00> : vector<64x128xf32>
    %49 = tpu.matmul %47, %48, %cst_11 {dimension_numbers = #tpu.dot_dimension_numbers<[1], [0], [0], [1], [0, 0, 1, 1], [], []>} : vector<64x128xf32>, vector<128x128xf32>, vector<64x128xf32> -> vector<64x128xf32>
    %50 = vector.broadcast %7 : vector<1x128xf32> to vector<64x128xf32>
    %51 = arith.addf %49, %50 : vector<64x128xf32>
    %cst_12 = arith.constant 0.000000e+00 : f32
    %52 = vector.broadcast %cst_12 : f32 to vector<64x128xf32>
    %53 = arith.maximumf %51, %52 : vector<64x128xf32>
    %cst_13 = arith.constant dense<0.000000e+00> : vector<128xf32>
    %54 = vector.multi_reduction <add>, %53, %cst_13 [0] : vector<64x128xf32> to vector<128xf32>
    %55 = vector.shape_cast %54 : vector<128xf32> to vector<1x128xf32>
    %cst_14 = arith.constant 6.400000e+01 : f32
    %56 = vector.broadcast %cst_14 : f32 to vector<1x128xf32>
    %57 = arith.divf %55, %56 : vector<1x128xf32>
    %58 = arith.mulf %53, %53 : vector<64x128xf32>
    %cst_15 = arith.constant dense<0.000000e+00> : vector<128xf32>
    %59 = vector.multi_reduction <add>, %58, %cst_15 [0] : vector<64x128xf32> to vector<128xf32>
    %60 = vector.shape_cast %59 : vector<128xf32> to vector<1x128xf32>
    %cst_16 = arith.constant 6.400000e+01 : f32
    %61 = vector.broadcast %cst_16 : f32 to vector<1x128xf32>
    %62 = arith.divf %60, %61 : vector<1x128xf32>
    %63 = arith.mulf %57, %57 : vector<1x128xf32>
    %64 = arith.subf %62, %63 : vector<1x128xf32>
    %cst_17 = arith.constant 0.000000e+00 : f32
    %65 = vector.broadcast %cst_17 : f32 to vector<1x128xf32>
    %66 = arith.maximumf %64, %65 : vector<1x128xf32>
    %cst_18 = arith.constant 9.99999974E-6 : f32
    %67 = vector.broadcast %cst_18 : f32 to vector<1x128xf32>
    %68 = arith.addf %66, %67 : vector<1x128xf32>
    %69 = math.rsqrt %68 : vector<1x128xf32>
    %70 = arith.mulf %8, %69 : vector<1x128xf32>
    %71 = vector.broadcast %70 : vector<1x128xf32> to vector<64x128xf32>
    %72 = arith.mulf %53, %71 : vector<64x128xf32>
    %73 = arith.mulf %57, %70 : vector<1x128xf32>
    %74 = arith.subf %9, %73 : vector<1x128xf32>
    %75 = vector.broadcast %74 : vector<1x128xf32> to vector<64x128xf32>
    %76 = arith.addf %72, %75 : vector<64x128xf32>
    %77 = vector.broadcast %10 : vector<1x128xf32> to vector<64x128xf32>
    %78 = arith.mulf %76, %77 : vector<64x128xf32>
    %cst_19 = arith.constant dense<0.000000e+00> : vector<64xf32>
    %79 = vector.multi_reduction <add>, %78, %cst_19 [1] : vector<64x128xf32> to vector<64xf32>
    %80 = vector.shape_cast %79 : vector<64xf32> to vector<64x1xf32>
    %81 = vector.broadcast %11 : vector<1x1xf32> to vector<64x1xf32>
    %82 = arith.addf %80, %81 : vector<64x1xf32>
    %cst_20 = arith.constant 5.000000e-01 : f32
    %83 = vector.broadcast %cst_20 : f32 to vector<64x1xf32>
    %84 = arith.mulf %83, %82 : vector<64x1xf32>
    %85 = math.tanh %84 : vector<64x1xf32>
    %cst_21 = arith.constant 5.000000e-01 : f32
    %86 = vector.broadcast %cst_21 : f32 to vector<64x1xf32>
    %87 = arith.mulf %86, %85 : vector<64x1xf32>
    %cst_22 = arith.constant 5.000000e-01 : f32
    %88 = vector.broadcast %cst_22 : f32 to vector<64x1xf32>
    %89 = arith.addf %87, %88 : vector<64x1xf32>
    %c0_23 = arith.constant 0 : index
    %c0_24 = arith.constant 0 : index
    %90 = vector.load %arg3[%c0_23, %c0_24] : memref<64x1xf32, #tpu.memory_space<vmem>>, vector<64x1xf32>
    tpu.vector_store %arg3[%c0_23, %c0_24], %89 {strides = array<i32>} : memref<64x1xf32, #tpu.memory_space<vmem>>, vector<64x1xf32>,
    return
  }
}

</mosaic_0001>

<llo_original>
// kernel: tpu_custom_call.1
$region0: #{tpu_custom_call.1}
  #allocation0 [shape = 'u32[]', space=smem, size = 0x4, offset = 0x4, fixed_abs, tag = 'smem constant byte address 0x4 - core index']
  #allocation1 [shape = 'u32[144,128]{1,0:T(1,128)}', space=vmem, size = 0x12000, scoped, tag = 'internal scratch']
  %s0 = inlined_call_operand.vmem [shape: f32[64,2], index: 0, kind: input, shape index: {}]
  %s1 = inlined_call_operand.vmem [shape: f32[16,128], index: 1, kind: input, shape index: {}]
  %s2 = inlined_call_operand.hbm [shape: f32[128,128], index: 2, kind: input, shape index: {}]
  %s3 = inlined_call_operand.vmem [shape: f32[64,1], index: 3, kind: output, shape index: {}]
  %s4 = sld [smem:[#allocation0]]
  $region26: #{tpu_custom_call.1} parent=0
    _
  %s6 = ssub.s32 1, %s4
  %s7 = scalar_select 0, %s6, %s4
  $region1: #{tpu_custom_call.1} parent=0
    #allocation2 [shape = 'u8[65536]{0}', space=vmem, size = 0x10000, scoped, tag = 'input window, operand 2, single buffered']
    #allocation3 [shape = 's32[1]{0}', space=sflag, size = 0x4, scoped, tag = 'scoped memory for tpu_custom_call.1']
    %8 = vsyncpa [#allocation3], 0
    // Predicated region
    $region2: #{tpu_custom_call.1} parent=1 // pred_check
      _
    $region3: #{tpu_custom_call.1} parent=1 // pred_check_branch
      %10 = sbr.rel (0) target = $region5
    $region4: #{tpu_custom_call.1} parent=1 // pred_region
      _
    $region5: #{tpu_custom_call.1} parent=1 // pred_fallthru
      _
    // Predicated region
    $region6: #{tpu_custom_call.1} parent=1 // pred_check
      _
    $region7: #{tpu_custom_call.1} parent=1 // pred_check_branch
      %12 = sbr.rel (0) target = $region9
    $region8: #{tpu_custom_call.1} parent=1 // pred_region
      _
    $region9: #{tpu_custom_call.1} parent=1 // pred_fallthru
      _
    // Predicated region
    $region10: #{tpu_custom_call.1} parent=1 // pred_check
      _
    $region11: #{tpu_custom_call.1} parent=1 // pred_check_branch
      %14 = sbr.rel (0) target = $region13
    $region12: #{tpu_custom_call.1} parent=1 // pred_region
      %s16 = ssub.s32 2048, 2048
      %17 = vsyncadd [#allocation3], %s16
      %s18 = sshll.u32 [#allocation2], 4
      %s19 = int_to_ptr.vmem [resolvable:$true] %s18
      %24 = dma.hbm_to_vmem [thread:$0]  %s2, 2048, %s19, [#allocation3], 128, 128, 8
    $region13: #{tpu_custom_call.1} parent=1 // pred_fallthru
      _
    // Predicated region
    $region14: #{tpu_custom_call.1} parent=1 // pred_check
      _
    $region15: #{tpu_custom_call.1} parent=1 // pred_check_branch
      %26 = sbr.rel (0) target = $region17
    $region16: #{tpu_custom_call.1} parent=1 // pred_region
      %27 = dma.done [#allocation3], 2048
    $region17: #{tpu_custom_call.1} parent=1 // pred_fallthru
      _
    %v28 = vld [vmem:[%s0] sm:$0xff]
    %v29 = vld [vmem:[%s0 + $0x8] sm:$0xff]
    %v30 = vld [vmem:[%s0 + $0x10] sm:$0xff]
    %v31 = vld [vmem:[%s0 + $0x18] sm:$0xff]
    %v32 = vld [vmem:[%s0 + $0x20] sm:$0xff]
    %v33 = vld [vmem:[%s0 + $0x28] sm:$0xff]
    %v34 = vld [vmem:[%s0 + $0x30] sm:$0xff]
    %v35 = vld [vmem:[%s0 + $0x38] sm:$0xff]
    %v36 = vld [vmem:[%s1] sm:$0xff]
    %v37 = vld [vmem:[%s1 + $0x8] sm:$0xff]
    %39 = vset.pattern.permute.xlu0 0
    %40 = vperm.xlu0 %39, %v28
    %v41 = vpop.permute.xlu0 %40
    %44 = vset.pattern.permute.xlu0 0
    %45 = vperm.xlu0 %44, %v29
    %v46 = vpop.permute.xlu0 %45
    %49 = vset.pattern.permute.xlu0 0
    %50 = vperm.xlu0 %49, %v30
    %v51 = vpop.permute.xlu0 %50
    %54 = vset.pattern.permute.xlu0 0
    %55 = vperm.xlu0 %54, %v31
    %v56 = vpop.permute.xlu0 %55
    %59 = vset.pattern.permute.xlu0 0
    %60 = vperm.xlu0 %59, %v32
    %v61 = vpop.permute.xlu0 %60
    %64 = vset.pattern.permute.xlu0 0
    %65 = vperm.xlu0 %64, %v33
    %v66 = vpop.permute.xlu0 %65
    %69 = vset.pattern.permute.xlu0 0
    %70 = vperm.xlu0 %69, %v34
    %v71 = vpop.permute.xlu0 %70
    %74 = vset.pattern.permute.xlu0 0
    %75 = vperm.xlu0 %74, %v35
    %v76 = vpop.permute.xlu0 %75
    %v78 = vlaneseq
    %v79 = vshrl.u32 %v78, 7
    %v80 = vsub.s32 0, %v79
    %v81 = vrot.slane %v36, %v80
    %v82 = vmul.f32 %v41, %v81
    %v83 = vmul.f32 %v46, %v81
    %v84 = vmul.f32 %v51, %v81
    %v85 = vmul.f32 %v56, %v81
    %v86 = vmul.f32 %v61, %v81
    %v87 = vmul.f32 %v66, %v81
    %v88 = vmul.f32 %v71, %v81
    %v89 = vmul.f32 %v76, %v81
    %90 = vset.pattern.permute.xlu0 1
    %91 = vperm.xlu0 %90, %v28
    %v92 = vpop.permute.xlu0 %91
    %94 = vset.pattern.permute.xlu0 1
    %95 = vperm.xlu0 %94, %v29
    %v96 = vpop.permute.xlu0 %95
    %98 = vset.pattern.permute.xlu0 1
    %99 = vperm.xlu0 %98, %v30
    %v100 = vpop.permute.xlu0 %99
    %102 = vset.pattern.permute.xlu0 1
    %103 = vperm.xlu0 %102, %v31
    %v104 = vpop.permute.xlu0 %103
    %106 = vset.pattern.permute.xlu0 1
    %107 = vperm.xlu0 %106, %v32
    %v108 = vpop.permute.xlu0 %107
    %110 = vset.pattern.permute.xlu0 1
    %111 = vperm.xlu0 %110, %v33
    %v112 = vpop.permute.xlu0 %111
    %114 = vset.pattern.permute.xlu0 1
    %115 = vperm.xlu0 %114, %v34
    %v116 = vpop.permute.xlu0 %115
    %118 = vset.pattern.permute.xlu0 1
    %119 = vperm.xlu0 %118, %v35
    %v120 = vpop.permute.xlu0 %119
    %v122 = vlaneseq
    %v123 = vshrl.u32 %v122, 7
    %v124 = vsub.s32 1, %v123
    %v125 = vrot.slane %v36, %v124
    %v126 = vmul.f32 %v92, %v125
    %v127 = vmul.f32 %v96, %v125
    %v128 = vmul.f32 %v100, %v125
    %v129 = vmul.f32 %v104, %v125
    %v130 = vmul.f32 %v108, %v125
    %v131 = vmul.f32 %v112, %v125
    %v132 = vmul.f32 %v116, %v125
    %v133 = vmul.f32 %v120, %v125
    %v134 = vadd.f32 %v82, %v126
    %v135 = vadd.f32 %v83, %v127
    %v136 = vadd.f32 %v84, %v128
    %v137 = vadd.f32 %v85, %v129
    %v138 = vadd.f32 %v86, %v130
    %v139 = vadd.f32 %v87, %v131
    %v140 = vadd.f32 %v88, %v132
    %v141 = vadd.f32 %v89, %v133
    %v142 = vlaneseq
    %v143 = vshrl.u32 %v142, 7
    %v144 = vsub.s32 2, %v143
    %v145 = vrot.slane %v36, %v144
    %v146 = vadd.f32 %v134, %v145
    %v147 = vadd.f32 %v135, %v145
    %v148 = vadd.f32 %v136, %v145
    %v149 = vadd.f32 %v137, %v145
    %v150 = vadd.f32 %v138, %v145
    %v151 = vadd.f32 %v139, %v145
    %v152 = vadd.f32 %v140, %v145
    %v153 = vadd.f32 %v141, %v145
    %v154 = vmax.f32 %v146, 0.0
    %v155 = vmax.f32 %v147, 0.0
    %v156 = vmax.f32 %v148, 0.0
    %v157 = vmax.f32 %v149, 0.0
    %v158 = vmax.f32 %v150, 0.0
    %v159 = vmax.f32 %v151, 0.0
    %v160 = vmax.f32 %v152, 0.0
    %v161 = vmax.f32 %v153, 0.0
    %v162 = vadd.f32 %v154, %v155
    %v163 = vadd.f32 %v162, %v156
    %v164 = vadd.f32 %v163, %v157
    %v165 = vadd.f32 %v164, %v158
    %v166 = vadd.f32 %v165, %v159
    %v167 = vadd.f32 %v166, %v160
    %v168 = vadd.f32 %v167, %v161
    %v169 = vrot.slane %v168, 4
    %v170 = vadd.f32 %v168, %v169
    %v171 = vrot.slane %v170, 2
    %v172 = vadd.f32 %v170, %v171
    %v173 = vrot.slane %v172, 1
    %v174 = vadd.f32 %v172, %v173
    %v175 = vrcp.pop 64.0
    %v176 = vmul.f32 %v174, %v175
    %v177 = vmul.f32 %v154, %v154
    %v178 = vmul.f32 %v155, %v155
    %v179 = vmul.f32 %v156, %v156
    %v180 = vmul.f32 %v157, %v157
    %v181 = vmul.f32 %v158, %v158
    %v182 = vmul.f32 %v159, %v159
    %v183 = vmul.f32 %v160, %v160
    %v184 = vmul.f32 %v161, %v161
    %v185 = vadd.f32 %v177, %v178
    %v186 = vadd.f32 %v185, %v179
    %v187 = vadd.f32 %v186, %v180
    %v188 = vadd.f32 %v187, %v181
    %v189 = vadd.f32 %v188, %v182
    %v190 = vadd.f32 %v189, %v183
    %v191 = vadd.f32 %v190, %v184
    %v192 = vrot.slane %v191, 4
    %v193 = vadd.f32 %v191, %v192
    %v194 = vrot.slane %v193, 2
    %v195 = vadd.f32 %v193, %v194
    %v196 = vrot.slane %v195, 1
    %v197 = vadd.f32 %v195, %v196
    %v198 = vmul.f32 %v197, %v175
    %v199 = vmul.f32 %v176, %v176
    %v200 = vsub.f32 %v198, %v199
    %v201 = vmax.f32 %v200, 0.0
    %v202 = vadd.f32 %v201, 1e-05
    %v203 = vrsqrt.pop %v202
    %v204 = vmul.f32 %v36, %v203
    %v205 = vlaneseq
    %v206 = vshrl.u32 %v205, 7
    %v207 = vsub.s32 3, %v206
    %v208 = vrot.slane %v204, %v207
    %v209 = vmul.f32 %v154, %v208
    %v210 = vmul.f32 %v155, %v208
    %v211 = vmul.f32 %v156, %v208
    %v212 = vmul.f32 %v157, %v208
    %v213 = vmul.f32 %v158, %v208
    %v214 = vmul.f32 %v159, %v208
    %v215 = vmul.f32 %v160, %v208
    %v216 = vmul.f32 %v161, %v208
    %v217 = vmul.f32 %v176, %v204
    %v219 = vrot.slane %v217, 7
    %v221 = vsub.f32 %v36, %v219
    %v222 = vlaneseq
    %v223 = vshrl.u32 %v222, 7
    %v224 = vsub.s32 4, %v223
    %v225 = vrot.slane %v221, %v224
    %v226 = vadd.f32 %v209, %v225
    %v227 = vadd.f32 %v210, %v225
    %v228 = vadd.f32 %v211, %v225
    %v229 = vadd.f32 %v212, %v225
    %v230 = vadd.f32 %v213, %v225
    %v231 = vadd.f32 %v214, %v225
    %v232 = vadd.f32 %v215, %v225
    %v233 = vadd.f32 %v216, %v225
    %v234 = vld [vmem:[#allocation2] sm:$0xff]
    %v235 = vld [vmem:[#allocation2 + $0x8] sm:$0xff]
    %v236 = vld [vmem:[#allocation2 + $0x10] sm:$0xff]
    %v237 = vld [vmem:[#allocation2 + $0x18] sm:$0xff]
    %v238 = vld [vmem:[#allocation2 + $0x20] sm:$0xff]
    %v239 = vld [vmem:[#allocation2 + $0x28] sm:$0xff]
    %v240 = vld [vmem:[#allocation2 + $0x30] sm:$0xff]
    %v241 = vld [vmem:[#allocation2 + $0x38] sm:$0xff]
    %v242 = vld [vmem:[#allocation2 + $0x40] sm:$0xff]
    %v243 = vld [vmem:[#allocation2 + $0x48] sm:$0xff]
    %v244 = vld [vmem:[#allocation2 + $0x50] sm:$0xff]
    %v245 = vld [vmem:[#allocation2 + $0x58] sm:$0xff]
    %v246 = vld [vmem:[#allocation2 + $0x60] sm:$0xff]
    %v247 = vld [vmem:[#allocation2 + $0x68] sm:$0xff]
    %v248 = vld [vmem:[#allocation2 + $0x70] sm:$0xff]
    %v249 = vld [vmem:[#allocation2 + $0x78] sm:$0xff]
    %v250 = vlaneseq
    %v251 = vshrl.u32 %v250, 7
    %v252 = vsub.s32 5, %v251
    %v253 = vrot.slane %v36, %v252
    %254 = vmatprep.subr.mxu0 0.0
    %255 = vmatpush1.msra.mxu0 %v234
    %256 = vmatprep.subr.mxu0 0.0
    %257 = vmatpush1.msra.mxu0 %v235
    %258 = vmatprep.subr.mxu0 0.0
    %259 = vmatpush1.msra.mxu0 %v236
    %260 = vmatprep.subr.mxu0 0.0
    %261 = vmatpush1.msra.mxu0 %v237
    %262 = vmatprep.subr.mxu0 0.0
    %263 = vmatpush1.msra.mxu0 %v238
    %264 = vmatprep.subr.mxu0 0.0
    %265 = vmatpush1.msra.mxu0 %v239
    %266 = vmatprep.subr.mxu0 0.0
    %267 = vmatpush1.msra.mxu0 %v240
    %268 = vmatprep.subr.mxu0 0.0
    %269 = vmatpush1.msra.mxu0 %v241
    %270 = vmatprep.subr.mxu0 0.0
    %271 = vmatpush1.msra.mxu0 %v242
    %272 = vmatprep.subr.mxu0 0.0
    %273 = vmatpush1.msra.mxu0 %v243
    %274 = vmatprep.subr.mxu0 0.0
    %275 = vmatpush1.msra.mxu0 %v244
    %276 = vmatprep.subr.mxu0 0.0
    %277 = vmatpush1.msra.mxu0 %v245
    %278 = vmatprep.subr.mxu0 0.0
    %279 = vmatpush1.msra.mxu0 %v246
    %280 = vmatprep.subr.mxu0 0.0
    %281 = vmatpush1.msra.mxu0 %v247
    %282 = vmatprep.subr.mxu0 0.0
    %283 = vmatpush1.msra.mxu0 %v248
    %284 = vmatprep.subr.mxu0 0.0
    %285 = vmatpush1.msra.mxu0 %v249
    %286 = vmatprep.subr.mxu0 0.0
    %287 = vmatpush1.msra.mxu0 0.0
    %288 = vmatprep.subr.mxu0 0.0
    %289 = vmatpush1.msra.mxu0 0.0
    %290 = vmatprep.subr.mxu0 0.0
    %291 = vmatpush1.msra.mxu0 0.0
    %292 = vmatprep.subr.mxu0 0.0
    %293 = vmatpush1.msra.mxu0 0.0
    %294 = vmatprep.subr.mxu0 0.0
    %295 = vmatpush1.msra.mxu0 0.0
    %296 = vmatprep.subr.mxu0 0.0
    %297 = vmatpush1.msra.mxu0 0.0
    %298 = vmatprep.subr.mxu0 0.0
    %299 = vmatpush1.msra.mxu0 0.0
    %300 = vmatprep.subr.mxu0 0.0
    %301 = vmatpush1.msra.mxu0 0.0
    %302 = vmatprep.subr.mxu0 0.0
    %303 = vmatpush1.msra.mxu0 0.0
    %304 = vmatprep.subr.mxu0 0.0
    %305 = vmatpush1.msra.mxu0 0.0
    %306 = vmatprep.subr.mxu0 0.0
    %307 = vmatpush1.msra.mxu0 0.0
    %308 = vmatprep.subr.mxu0 0.0
    %309 = vmatpush1.msra.mxu0 0.0
    %310 = vmatprep.subr.mxu0 0.0
    %311 = vmatpush1.msra.mxu0 0.0
    %312 = vmatprep.subr.mxu0 0.0
    %313 = vmatpush1.msra.mxu0 0.0
    %314 = vmatprep.subr.mxu0 0.0
    %315 = vmatpush1.msra.mxu0 0.0
    %316 = vmatprep.subr.mxu0 0.0
    %317 = vmatpush1.msra.mxu0 0.0
    %318 = vmatprep.mubr.f32.mxu0 0.0
    %319 = vmatmul.mubr.f32.gmra.mrb[0].mxu0 %v226
    %v320 = vpop.f32.mrb[0].mxu0
    %v321 = vadd.f32 %v253, %v320
    %v322 = vpop.f32.mrb[0].mxu0
    %323 = vmatprep.mubr.f32.mxu0 0.0
    %324 = vmatmul.mubr.f32.gmra.mrb[0].mxu0 %v227
    %v325 = vpop.f32.mrb[0].mxu0
    %v326 = vadd.f32 %v253, %v325
    %v327 = vpop.f32.mrb[0].mxu0
    %328 = vmatprep.mubr.f32.mxu0 0.0
    %329 = vmatmul.mubr.f32.gmra.mrb[0].mxu0 %v228
    %v330 = vpop.f32.mrb[0].mxu0
    %v331 = vadd.f32 %v253, %v330
    %v332 = vpop.f32.mrb[0].mxu0
    %333 = vmatprep.mubr.f32.mxu0 0.0
    %334 = vmatmul.mubr.f32.gmra.mrb[0].mxu0 %v229
    %v335 = vpop.f32.mrb[0].mxu0
    %v336 = vadd.f32 %v253, %v335
    %v337 = vpop.f32.mrb[0].mxu0
    %338 = vmatprep.mubr.f32.mxu0 0.0
    %339 = vmatmul.mubr.f32.gmra.mrb[0].mxu0 %v230
    %v340 = vpop.f32.mrb[0].mxu0
    %v341 = vadd.f32 %v253, %v340
    %v342 = vpop.f32.mrb[0].mxu0
    %343 = vmatprep.mubr.f32.mxu0 0.0
    %344 = vmatmul.mubr.f32.gmra.mrb[0].mxu0 %v231
    %v345 = vpop.f32.mrb[0].mxu0
    %v346 = vadd.f32 %v253, %v345
    %v347 = vpop.f32.mrb[0].mxu0
    %348 = vmatprep.mubr.f32.mxu0 0.0
    %349 = vmatmul.mubr.f32.gmra.mrb[0].mxu0 %v232
    %v350 = vpop.f32.mrb[0].mxu0
    %v351 = vadd.f32 %v253, %v350
    %v352 = vpop.f32.mrb[0].mxu0
    %353 = vmatprep.mubr.f32.mxu0 0.0
    %354 = vmatmul.mubr.f32.gmra.mrb[0].mxu0 %v233
    %v355 = vpop.f32.mrb[0].mxu0
    %v356 = vadd.f32 %v253, %v355
    %v357 = vpop.f32.mrb[0].mxu0
    %358 = vdwg.mxu0
    %v359 = vmax.f32 %v321, 0.0
    %v360 = vmax.f32 %v326, 0.0
    %v361 = vmax.f32 %v331, 0.0
    %v362 = vmax.f32 %v336, 0.0
    %v363 = vmax.f32 %v341, 0.0
    %v364 = vmax.f32 %v346, 0.0
    %v365 = vmax.f32 %v351, 0.0
    %v366 = vmax.f32 %v356, 0.0
    %v367 = vadd.f32 %v359, %v360
    %v368 = vadd.f32 %v367, %v361
    %v369 = vadd.f32 %v368, %v362
    %v370 = vadd.f32 %v369, %v363
    %v371 = vadd.f32 %v370, %v364
    %v372 = vadd.f32 %v371, %v365
    %v373 = vadd.f32 %v372, %v366
    %v374 = vrot.slane %v373, 4
    %v375 = vadd.f32 %v373, %v374
    %v376 = vrot.slane %v375, 2
    %v377 = vadd.f32 %v375, %v376
    %v378 = vrot.slane %v377, 1
    %v379 = vadd.f32 %v377, %v378
    %v380 = vmul.f32 %v379, %v175
    %v381 = vmul.f32 %v359, %v359
    %v382 = vmul.f32 %v360, %v360
    %v383 = vmul.f32 %v361, %v361
    %v384 = vmul.f32 %v362, %v362
    %v385 = vmul.f32 %v363, %v363
    %v386 = vmul.f32 %v364, %v364
    %v387 = vmul.f32 %v365, %v365
    %v388 = vmul.f32 %v366, %v366
    %v389 = vadd.f32 %v381, %v382
    %v390 = vadd.f32 %v389, %v383
    %v391 = vadd.f32 %v390, %v384
    %v392 = vadd.f32 %v391, %v385
    %v393 = vadd.f32 %v392, %v386
    %v394 = vadd.f32 %v393, %v387
    %v395 = vadd.f32 %v394, %v388
    %v396 = vrot.slane %v395, 4
    %v397 = vadd.f32 %v395, %v396
    %v398 = vrot.slane %v397, 2
    %v399 = vadd.f32 %v397, %v398
    %v400 = vrot.slane %v399, 1
    %v401 = vadd.f32 %v399, %v400
    %v402 = vmul.f32 %v401, %v175
    %v403 = vmul.f32 %v380, %v380
    %v404 = vsub.f32 %v402, %v403
    %v405 = vmax.f32 %v404, 0.0
    %v406 = vadd.f32 %v405, 1e-05
    %v407 = vrsqrt.pop %v406
    %v408 = vmul.f32 %v36, %v407
    %v409 = vlaneseq
    %v410 = vshrl.u32 %v409, 7
    %v411 = vsub.s32 6, %v410
    %v412 = vrot.slane %v408, %v411
    %v413 = vmul.f32 %v359, %v412
    %v414 = vmul.f32 %v360, %v412
    %v415 = vmul.f32 %v361, %v412
    %v416 = vmul.f32 %v362, %v412
    %v417 = vmul.f32 %v363, %v412
    %v418 = vmul.f32 %v364, %v412
    %v419 = vmul.f32 %v365, %v412
    %v420 = vmul.f32 %v366, %v412
    %v421 = vmul.f32 %v380, %v408
    %v423 = vrot.slane %v421, 7
    %v425 = vsub.f32 %v36, %v423
    %v426 = vlaneseq
    %v427 = vshrl.u32 %v426, 7
    %v428 = vsub.s32 7, %v427
    %v429 = vrot.slane %v425, %v428
    %v430 = vadd.f32 %v413, %v429
    %v431 = vadd.f32 %v414, %v429
    %v432 = vadd.f32 %v415, %v429
    %v433 = vadd.f32 %v416, %v429
    %v434 = vadd.f32 %v417, %v429
    %v435 = vadd.f32 %v418, %v429
    %v436 = vadd.f32 %v419, %v429
    %v437 = vadd.f32 %v420, %v429
    %v438 = vlaneseq
    %v439 = vshrl.u32 %v438, 7
    %v440 = vsub.s32 0, %v439
    %v441 = vrot.slane %v37, %v440
    %v442 = vmul.f32 %v430, %v441
    %v443 = vmul.f32 %v431, %v441
    %v444 = vmul.f32 %v432, %v441
    %v445 = vmul.f32 %v433, %v441
    %v446 = vmul.f32 %v434, %v441
    %v447 = vmul.f32 %v435, %v441
    %v448 = vmul.f32 %v436, %v441
    %v449 = vmul.f32 %v437, %v441
    %450 = vadd.xlane.f32.xlu0 %v442
    %v451 = vpop.xlane.xlu0 %450
    %452 = vadd.xlane.f32.xlu0 %v443
    %v453 = vpop.xlane.xlu0 %452
    %454 = vadd.xlane.f32.xlu0 %v444
    %v455 = vpop.xlane.xlu0 %454
    %456 = vadd.xlane.f32.xlu0 %v445
    %v457 = vpop.xlane.xlu0 %456
    %458 = vadd.xlane.f32.xlu0 %v446
    %v459 = vpop.xlane.xlu0 %458
    %460 = vadd.xlane.f32.xlu0 %v447
    %v461 = vpop.xlane.xlu0 %460
    %462 = vadd.xlane.f32.xlu0 %v448
    %v463 = vpop.xlane.xlu0 %462
    %464 = vadd.xlane.f32.xlu0 %v449
    %v465 = vpop.xlane.xlu0 %464
    %v466 = vlaneseq
    %v467 = vshrl.u32 %v466, 7
    %v468 = vsub.s32 1, %v467
    %v469 = vrot.slane %v37, %v468
    %v470 = vadd.f32 %v451, %v469
    %v471 = vadd.f32 %v453, %v469
    %v472 = vadd.f32 %v455, %v469
    %v473 = vadd.f32 %v457, %v469
    %v474 = vadd.f32 %v459, %v469
    %v475 = vadd.f32 %v461, %v469
    %v476 = vadd.f32 %v463, %v469
    %v477 = vadd.f32 %v465, %v469
    %v478 = vmul.f32 %v470, 0.5
    %v479 = vmul.f32 %v471, 0.5
    %v480 = vmul.f32 %v472, 0.5
    %v481 = vmul.f32 %v473, 0.5
    %v482 = vmul.f32 %v474, 0.5
    %v483 = vmul.f32 %v475, 0.5
    %v484 = vmul.f32 %v476, 0.5
    %v485 = vmul.f32 %v477, 0.5
    %v486 = vtanh.pop %v478
    %v487 = vtanh.pop %v479
    %v488 = vtanh.pop %v480
    %v489 = vtanh.pop %v481
    %v490 = vtanh.pop %v482
    %v491 = vtanh.pop %v483
    %v492 = vtanh.pop %v484
    %v493 = vtanh.pop %v485
    %v494 = vmul.f32 %v486, 0.5
    %v495 = vmul.f32 %v487, 0.5
    %v496 = vmul.f32 %v488, 0.5
    %v497 = vmul.f32 %v489, 0.5
    %v498 = vmul.f32 %v490, 0.5
    %v499 = vmul.f32 %v491, 0.5
    %v500 = vmul.f32 %v492, 0.5
    %v501 = vmul.f32 %v493, 0.5
    %v502 = vadd.f32 %v494, 0.5
    %v503 = vadd.f32 %v495, 0.5
    %v504 = vadd.f32 %v496, 0.5
    %v505 = vadd.f32 %v497, 0.5
    %v506 = vadd.f32 %v498, 0.5
    %v507 = vadd.f32 %v499, 0.5
    %v508 = vadd.f32 %v500, 0.5
    %v509 = vadd.f32 %v501, 0.5
    %vm510 = vcmask 7168
    %511 = vst.msk [vmem:[%s3] sm:$0xff] %vm510, %v502
    %512 = vst.msk [vmem:[%s3 + $0x8] sm:$0xff] %vm510, %v503
    %513 = vst.msk [vmem:[%s3 + $0x10] sm:$0xff] %vm510, %v504
    %514 = vst.msk [vmem:[%s3 + $0x18] sm:$0xff] %vm510, %v505
    %515 = vst.msk [vmem:[%s3 + $0x20] sm:$0xff] %vm510, %v506
    %516 = vst.msk [vmem:[%s3 + $0x28] sm:$0xff] %vm510, %v507
    %517 = vst.msk [vmem:[%s3 + $0x30] sm:$0xff] %vm510, %v508
    %518 = vst.msk [vmem:[%s3 + $0x38] sm:$0xff] %vm510, %v509
    // Predicated region
    $region18: #{tpu_custom_call.1} parent=1 // pred_check
      _
    $region19: #{tpu_custom_call.1} parent=1 // pred_check_branch
      %520 = sbr.rel (0) target = $region21
    $region20: #{tpu_custom_call.1} parent=1 // pred_region
      _
    $region21: #{tpu_custom_call.1} parent=1 // pred_fallthru
      _
    // Predicated region
    $region22: #{tpu_custom_call.1} parent=1 // pred_check
      _
    $region23: #{tpu_custom_call.1} parent=1 // pred_check_branch
      %522 = sbr.rel (0) target = $region25
    $region24: #{tpu_custom_call.1} parent=1 // pred_region
      _
    $region25: #{tpu_custom_call.1} parent=1 // pred_fallthru
      _
    %523 = vsyncpa [#allocation3], 1

</llo_original>
